<compile_context>
chip_gen: v5e
topology: v5e:2x2
jax: 0.10.0
libtpu: 0.0.40
codegen_flags: <defaults>
</compile_context>

<pallas_src>
import functools

import jax
import jax.numpy as jnp
from jax import lax
from jax.experimental import pallas as pl
from jax.experimental.pallas import tpu as pltpu


def _round_up(v, m):
    return ((v + m - 1) // m) * m


def _physical_vmem_bytes():
    try:
        info = pltpu.get_tpu_info()
        v = getattr(info, "vmem_capacity_bytes", None)
        if v:
            return int(v)
    except Exception:
        pass
    return 64 << 20  # conservative default: v7x per-TC VMEM


# --------------------------------------------------------------------------
# Main (single streaming pass) kernel: whole (Bt, C, HW) slab per grid step.
# --------------------------------------------------------------------------
def _channel_attention_kernel(x_ref, w1t_ref, w2t_ref, o_ref, *, inv_hw):
    # x_ref : (Bt, C, HW)   -- HW is the logical (unpadded) extent.
    # w1t_ref: (C, Cr)      -- first Linear weight, transposed to (in, out)
    # w2t_ref: (Cr, C)      -- second Linear weight, transposed to (in, out)
    xv = x_ref[...]                                           # (Bt, C, HW) f32

    # Pooling over the flattened spatial (lane) axis.  The logical shape is
    # the unpadded HW, so no explicit masking is needed.
    max_pool = jnp.max(xv, axis=-1)                           # (Bt, C)
    avg_pool = jnp.sum(xv, axis=-1) * inv_hw                  # (Bt, C)

    # Squeeze-excite MLP (tiny; entirely off the critical path).
    def fc(v):
        h = jnp.dot(v, w1t_ref[...], preferred_element_type=jnp.float32)
        h = jnp.maximum(h, 0.0)
        return jnp.dot(h, w2t_ref[...], preferred_element_type=jnp.float32)

    att = jax.nn.sigmoid(fc(avg_pool) + fc(max_pool))         # (Bt, C)

    # Channel-wise scaling, fused into the single output store.
    o_ref[...] = (xv * att[:, :, None]).astype(o_ref.dtype)


# --------------------------------------------------------------------------
# Fallback path (huge C*H*W): lane-tiled pooling + lane-tiled scaling.
# --------------------------------------------------------------------------
def _pool_kernel(x_ref, sum_ref, max_ref, *, hw, t_hw, need_mask):
    t = pl.program_id(1)
    xv = x_ref[...]                                           # (1, C, t_hw)
    if need_mask:
        lane = lax.broadcasted_iota(jnp.int32, xv.shape, 2) + t * t_hw
        valid = lane < hw
        x_sum = jnp.where(valid, xv, 0.0)
        x_max = jnp.where(valid, xv, -jnp.inf)
    else:
        x_sum = xv
        x_max = xv
    psum = jnp.sum(x_sum, axis=-1, keepdims=True)             # (1, C, 1)
    pmax = jnp.max(x_max, axis=-1, keepdims=True)             # (1, C, 1)

    @pl.when(t == 0)
    def _():
        sum_ref[...] = jnp.zeros(sum_ref.shape, sum_ref.dtype)
        max_ref[...] = jnp.full(max_ref.shape, -jnp.inf, max_ref.dtype)

    sum_ref[...] += psum
    max_ref[...] = jnp.maximum(max_ref[...], pmax)


def _scale_kernel(x_ref, att_ref, o_ref):
    # (1, C, t_hw) * (1, C, 1) -> (1, C, t_hw); OOB lanes of edge blocks are
    # dropped by Pallas on writeback.
    o_ref[...] = (x_ref[...] * att_ref[...]).astype(o_ref.dtype)


def _channel_attention_hw_tiled(x2, w1t, w2t, hw, c, b, budget, physical):
    c_phys = _round_up(c, 8)
    # Lane-tile size: multiple of 128 such that ~5 tiles (double-buffered
    # in + out + temporaries) fit in the budget.
    t_hw = (budget // (20 * c_phys)) // 128 * 128
    t_hw = max(128, min(t_hw, _round_up(hw, 128)))
    n_t = -(-hw // t_hw)
    need_mask = (hw % t_hw) != 0
    tile_bytes = c_phys * t_hw * 4

    pool_kernel = functools.partial(
        _pool_kernel, hw=hw, t_hw=t_hw, need_mask=need_mask)

    sum_pool, max_pool = pl.pallas_call(
        pool_kernel,
        out_shape=(jax.ShapeDtypeStruct((b, c, 1), jnp.float32),
                   jax.ShapeDtypeStruct((b, c, 1), jnp.float32)),
        grid_spec=pltpu.PrefetchScalarGridSpec(
            num_scalar_prefetch=0,
            grid=(b, n_t),
            in_specs=[pl.BlockSpec((1, c, t_hw), lambda i, t: (i, 0, t))],
            out_specs=[pl.BlockSpec((1, c, 1), lambda i, t: (i, 0, 0)),
                       pl.BlockSpec((1, c, 1), lambda i, t: (i, 0, 0))],
        ),
        compiler_params=pltpu.CompilerParams(
            dimension_semantics=("parallel", "arbitrary"),
            vmem_limit_bytes=max(16 << 20,
                                 min(physical, 3 * tile_bytes + (8 << 20)))),
    )(x2)

    # Tiny MLP on the pooled vectors in plain JAX (negligible work).
    avg = sum_pool[:, :, 0] * (1.0 / hw)                      # (B, C)
    mx = max_pool[:, :, 0]                                    # (B, C)

    def fc(v):
        return jnp.maximum(v @ w1t, 0.0) @ w2t

    att = jax.nn.sigmoid(fc(avg) + fc(mx))[:, :, None]        # (B, C, 1)

    out = pl.pallas_call(
        _scale_kernel,
        out_shape=jax.ShapeDtypeStruct((b, c, hw), x2.dtype),
        grid_spec=pltpu.PrefetchScalarGridSpec(
            num_scalar_prefetch=0,
            grid=(b, n_t),
            in_specs=[pl.BlockSpec((1, c, t_hw), lambda i, t: (i, 0, t)),
                      pl.BlockSpec((1, c, 1), lambda i, t: (i, 0, 0))],
            out_specs=pl.BlockSpec((1, c, t_hw), lambda i, t: (i, 0, t)),
        ),
        compiler_params=pltpu.CompilerParams(
            dimension_semantics=("parallel", "parallel"),
            vmem_limit_bytes=max(16 << 20,
                                 min(physical, 5 * tile_bytes + (8 << 20)))),
    )(x2, att)
    return out


# --------------------------------------------------------------------------
# Wrapper
# --------------------------------------------------------------------------
def channel_attention(x, w1, w2, *, vmem_budget_bytes=None):
    """x: (B, C, H, W) f32; w1: (C//r, C); w2: (C, C//r). Returns (B, C, H, W)."""
    b, c, h, w = x.shape
    hw = h * w
    cr = w1.shape[0]

    x2 = x.reshape(b, c, hw)        # free collapse of last two dims
    w1t = w1.T                      # (C, Cr)
    w2t = w2.T                      # (Cr, C)

    physical = _physical_vmem_bytes()
    budget = (vmem_budget_bytes if vmem_budget_bytes is not None
              else (physical * 3) // 5)          # ~0.6 of physical VMEM

    # Per-batch-element slab footprint in physical (8,128)-tiled VMEM layout.
    c_phys = _round_up(c, 8)
    hw_phys = _round_up(hw, 128)
    slab_bytes = c_phys * hw_phys * 4
    weight_bytes = 2 * _round_up(c, 128) * _round_up(cr, 128) * 4  # tiny

    def footprint(bt):
        # 2x double-buffered input + 2x output + ~1 block of compiler
        # temporaries, plus weights and fixed headroom.
        return 5 * bt * slab_bytes + 4 * weight_bytes + (8 << 20)

    bt = 0
    for cand in range(b, 0, -1):
        if b % cand != 0:
            continue
        if b >= 2 and b // cand < 2:
            continue  # keep >=2 grid steps so both v7x TensorCores get work
        if footprint(cand) <= budget:
            bt = cand
            break

    if bt == 0:
        # Even a single batch element does not fit: lane-tiled two-pass path.
        out = _channel_attention_hw_tiled(x2, w1t, w2t, hw, c, b,
                                          budget, physical)
        return out.reshape(b, c, h, w)

    vmem_limit = max(16 << 20, min(physical, footprint(bt)))
    kernel = functools.partial(_channel_attention_kernel, inv_hw=1.0 / hw)

    out = pl.pallas_call(
        kernel,
        out_shape=jax.ShapeDtypeStruct((b, c, hw), x.dtype),
        grid_spec=pltpu.PrefetchScalarGridSpec(
            num_scalar_prefetch=0,
            grid=(b // bt,),
            in_specs=[
                pl.BlockSpec((bt, c, hw), lambda i: (i, 0, 0)),
                pl.BlockSpec((c, cr), lambda i: (0, 0)),
                pl.BlockSpec((cr, c), lambda i: (0, 0)),
            ],
            out_specs=pl.BlockSpec((bt, c, hw), lambda i: (i, 0, 0)),
        ),
        compiler_params=pltpu.CompilerParams(
            dimension_semantics=("parallel",),
            vmem_limit_bytes=vmem_limit),
    )(x2, w1t, w2t)

    return out.reshape(b, c, h, w)


def channel_attention_ref(x, w1, w2):
    """Pure-JAX reference mirroring the PyTorch forward."""
    b, c, _, _ = x.shape
    avg = jnp.mean(x, axis=(2, 3))                            # (B, C)
    mx = jnp.max(x, axis=(2, 3))                              # (B, C)

    def fc(v):
        return jnp.maximum(v @ w1.T, 0.0) @ w2.T

    y = jax.nn.sigmoid(fc(avg) + fc(mx)).reshape(b, c, 1, 1)
    return x * y


def _make_case(key, b, c, h, w, reduction):
    cr = c // reduction
    kx, k1, k2 = jax.random.split(key, 3)
    x = jax.random.normal(kx, (b, c, h, w), dtype=jnp.float32)
    # nn.Linear-like scale, PyTorch (out, in) layout.
    w1 = jax.random.uniform(k1, (cr, c), jnp.float32, -1.0, 1.0) / jnp.sqrt(c)
    w2 = jax.random.uniform(k2, (c, cr), jnp.float32, -1.0, 1.0) / jnp.sqrt(cr)
    return x, w1, w2


if __name__ == "__main__":
    key = jax.random.PRNGKey(0)
    k1, k2, k3 = jax.random.split(key, 3)

    # 1) Main path, HW a multiple of 128.
    x_a, w1_a, w2_a = _make_case(k1, 2, 64, 16, 16, reduction=16)
    out_a = jax.block_until_ready(channel_attention(x_a, w1_a, w2_a))
    ref_a = channel_attention_ref(x_a, w1_a, w2_a)
    assert out_a.shape == x_a.shape
    assert jnp.allclose(out_a, ref_a, atol=1e-5, rtol=1e-5), "mismatch (aligned)"

    # 2) Main path, HW not a multiple of 128 (unpadded full-extent block).
    x_b, w1_b, w2_b = _make_case(k2, 2, 32, 7, 7, reduction=8)
    out_b = jax.block_until_ready(channel_attention(x_b, w1_b, w2_b))
    ref_b = channel_attention_ref(x_b, w1_b, w2_b)
    assert jnp.allclose(out_b, ref_b, atol=1e-5, rtol=1e-5), "mismatch (ragged)"

    # 3) Forced HW-tiling fallback (tiny VMEM budget): multi-tile accumulation
    #    plus tail-lane masking (hw = 324 -> 3 tiles of 128 with remainder 68).
    x_c, w1_c, w2_c = _make_case(k3, 2, 64, 18, 18, reduction=16)
    out_c = jax.block_until_ready(
        channel_attention(x_c, w1_c, w2_c, vmem_budget_bytes=200 * 1024))
    ref_c = channel_attention_ref(x_c, w1_c, w2_c)
    assert jnp.allclose(out_c, ref_c, atol=1e-5, rtol=1e-5), "mismatch (tiled)"

    print("KERNEL_OK")
</pallas_src>

<mosaic_0001>
module attributes {stable_mosaic.version = 11 : i64} {
  func.func @_channel_attention_kernel(%arg0: i32, %arg1: memref<1x64x256xf32, #tpu.memory_space<vmem>>, %arg2: memref<64x4xf32, #tpu.memory_space<vmem>>, %arg3: memref<4x64xf32, #tpu.memory_space<vmem>>, %arg4: memref<1x64x256xf32, #tpu.memory_space<vmem>>) attributes {dimension_semantics = [#tpu.dimension_semantics<parallel>], iteration_bounds = array<i64: 2>, scalar_prefetch = 0 : i64, scratch_operands = 0 : i64, tpu.core_type = #tpu.core_type<tc>, window_params = [{transform_indices = @transform_0, window_bounds = array<i64: 1, 64, 256>}, {pipeline_mode = #tpu.pipeline_mode<synchronous>, transform_indices = @transform_1, window_bounds = array<i64: 64, 4>}, {pipeline_mode = #tpu.pipeline_mode<synchronous>, transform_indices = @transform_2, window_bounds = array<i64: 4, 64>}, {transform_indices = @transform_3, window_bounds = array<i64: 1, 64, 256>}]} {
    %c0 = arith.constant 0 : index
    %c0_0 = arith.constant 0 : index
    %c0_1 = arith.constant 0 : index
    %0 = vector.load %arg1[%c0, %c0_0, %c0_1] : memref<1x64x256xf32, #tpu.memory_space<vmem>>, vector<1x64x256xf32>
    %cst = arith.constant dense<0xFF800000> : vector<1x64xf32>
    %1 = vector.multi_reduction <maximumf>, %0, %cst [2] : vector<1x64x256xf32> to vector<1x64xf32>
    %cst_2 = arith.constant dense<0.000000e+00> : vector<1x64xf32>
    %2 = vector.multi_reduction <add>, %0, %cst_2 [2] : vector<1x64x256xf32> to vector<1x64xf32>
    %cst_3 = arith.constant 3.906250e-03 : f32
    %3 = vector.broadcast %cst_3 : f32 to vector<1x64xf32>
    %4 = arith.mulf %2, %3 : vector<1x64xf32>
    %c0_4 = arith.constant 0 : index
    %c0_5 = arith.constant 0 : index
    %5 = vector.load %arg2[%c0_4, %c0_5] : memref<64x4xf32, #tpu.memory_space<vmem>>, vector<64x4xf32>
    %cst_6 = arith.constant dense<0.000000e+00> : vector<1x4xf32>
    %6 = tpu.matmul %4, %5, %cst_6 {dimension_numbers = #tpu.dot_dimension_numbers<[1], [0], [0], [1], [0, 0, 1, 1], [], []>} : vector<1x64xf32>, vector<64x4xf32>, vector<1x4xf32> -> vector<1x4xf32>
    %cst_7 = arith.constant 0.000000e+00 : f32
    %7 = vector.broadcast %cst_7 : f32 to vector<1x4xf32>
    %8 = arith.maximumf %6, %7 : vector<1x4xf32>
    %c0_8 = arith.constant 0 : index
    %c0_9 = arith.constant 0 : index
    %9 = vector.load %arg3[%c0_8, %c0_9] : memref<4x64xf32, #tpu.memory_space<vmem>>, vector<4x64xf32>
    %cst_10 = arith.constant dense<0.000000e+00> : vector<1x64xf32>
    %10 = tpu.matmul %8, %9, %cst_10 {dimension_numbers = #tpu.dot_dimension_numbers<[1], [0], [0], [1], [0, 0, 1, 1], [], []>} : vector<1x4xf32>, vector<4x64xf32>, vector<1x64xf32> -> vector<1x64xf32>
    %c0_11 = arith.constant 0 : index
    %c0_12 = arith.constant 0 : index
    %11 = vector.load %arg2[%c0_11, %c0_12] : memref<64x4xf32, #tpu.memory_space<vmem>>, vector<64x4xf32>
    %cst_13 = arith.constant dense<0.000000e+00> : vector<1x4xf32>
    %12 = tpu.matmul %1, %11, %cst_13 {dimension_numbers = #tpu.dot_dimension_numbers<[1], [0], [0], [1], [0, 0, 1, 1], [], []>} : vector<1x64xf32>, vector<64x4xf32>, vector<1x4xf32> -> vector<1x4xf32>
    %cst_14 = arith.constant 0.000000e+00 : f32
    %13 = vector.broadcast %cst_14 : f32 to vector<1x4xf32>
    %14 = arith.maximumf %12, %13 : vector<1x4xf32>
    %c0_15 = arith.constant 0 : index
    %c0_16 = arith.constant 0 : index
    %15 = vector.load %arg3[%c0_15, %c0_16] : memref<4x64xf32, #tpu.memory_space<vmem>>, vector<4x64xf32>
    %cst_17 = arith.constant dense<0.000000e+00> : vector<1x64xf32>
    %16 = tpu.matmul %14, %15, %cst_17 {dimension_numbers = #tpu.dot_dimension_numbers<[1], [0], [0], [1], [0, 0, 1, 1], [], []>} : vector<1x4xf32>, vector<4x64xf32>, vector<1x64xf32> -> vector<1x64xf32>
    %17 = arith.addf %10, %16 : vector<1x64xf32>
    %18 = arith.negf %17 : vector<1x64xf32>
    %19 = math.exp %18 : vector<1x64xf32>
    %cst_18 = arith.constant 1.000000e+00 : f32
    %20 = vector.broadcast %cst_18 : f32 to vector<1x64xf32>
    %21 = arith.addf %20, %19 : vector<1x64xf32>
    %22 = arith.divf %20, %21 : vector<1x64xf32>
    %23 = vector.shape_cast %22 : vector<1x64xf32> to vector<1x64x1xf32>
    %24 = vector.broadcast %23 : vector<1x64x1xf32> to vector<1x64x256xf32>
    %25 = arith.mulf %0, %24 : vector<1x64x256xf32>
    %c0_19 = arith.constant 0 : index
    %c0_20 = arith.constant 0 : index
    %c0_21 = arith.constant 0 : index
    %26 = vector.load %arg4[%c0_19, %c0_20, %c0_21] : memref<1x64x256xf32, #tpu.memory_space<vmem>>, vector<1x64x256xf32>
    tpu.vector_store %arg4[%c0_19, %c0_20, %c0_21], %25 {strides = array<i32>} : memref<1x64x256xf32, #tpu.memory_space<vmem>>, vector<1x64x256xf32>,
    return
  }
  func.func @transform_0(%arg0: i32) -> (i32, i32, i32) {
    %c0_i32 = arith.constant 0 : i32
    %c0_i32_0 = arith.constant 0 : i32
    %c0_i32_1 = arith.constant 0 : i32
    return %arg0, %c0_i32, %c0_i32_0 : i32, i32, i32
  }
  func.func @transform_1(%arg0: i32) -> (i32, i32) {
    %c0_i32 = arith.constant 0 : i32
    %c0_i32_0 = arith.constant 0 : i32
    %c0_i32_1 = arith.constant 0 : i32
    return %c0_i32, %c0_i32_0 : i32, i32
  }
  func.func @transform_2(%arg0: i32) -> (i32, i32) {
    %c0_i32 = arith.constant 0 : i32
    %c0_i32_0 = arith.constant 0 : i32
    %c0_i32_1 = arith.constant 0 : i32
    return %c0_i32, %c0_i32_0 : i32, i32
  }
  func.func @transform_3(%arg0: i32) -> (i32, i32, i32) {
    %c0_i32 = arith.constant 0 : i32
    %c0_i32_0 = arith.constant 0 : i32
    %c0_i32_1 = arith.constant 0 : i32
    return %arg0, %c0_i32, %c0_i32_0 : i32, i32, i32
  }
}

</mosaic_0001>

<llo_original>
// kernel: tpu_custom_call.1
$region0: #{tpu_custom_call.1}
  #allocation0 [shape = 'u32[]', space=smem, size = 0x4, offset = 0x4, fixed_abs, tag = 'smem constant byte address 0x4 - core index']
  #allocation1 [shape = 'u32[72,128]{1,0:T(1,128)}', space=vmem, size = 0x9000, scoped, tag = 'internal scratch']
  %s0 = inlined_call_operand.hbm [shape: f32[2,64,256], index: 0, kind: input, shape index: {}]
  %s1 = inlined_call_operand.vmem [shape: f32[64,4], index: 1, kind: input, shape index: {}]
  %s2 = inlined_call_operand.vmem [shape: f32[4,64], index: 2, kind: input, shape index: {}]
  %s3 = inlined_call_operand.hbm [shape: f32[2,64,256], index: 3, kind: output, shape index: {}]
  %s4 = sld [smem:[#allocation0]]
  $region49: #{tpu_custom_call.1} parent=0
    _
  %s6 = ssub.s32 1, %s4
  %s7 = scalar_select 0, %s6, %s4
  $region1: #{tpu_custom_call.1} parent=0
    #allocation2 [shape = 'u8[131072]{0}', space=vmem, size = 0x20000, scoped, tag = 'input window, operand 0']
    #allocation3 [shape = 's32[2]{0}', space=sflag, size = 0x8, scoped, tag = 'scoped memory for tpu_custom_call.1']
    #allocation4 [shape = 's32[2]{0}', space=sflag, size = 0x8, scoped, tag = 'scoped memory for tpu_custom_call.1']
    #allocation5 [shape = 'u8[131072]{0}', space=vmem, size = 0x20000, scoped, tag = 'output window, operand 0']
    %8 = vsyncpa [#allocation3], 0
    %s9 = scalar_lea.sflag [#allocation3], 1
    %10 = vsyncpa %s9, 0
    %11 = vsyncpa [#allocation4], 0
    %s12 = scalar_lea.sflag [#allocation4], 1
    %13 = vsyncpa %s12, 0
    loop: start=0, step=1, limit=4
    $region2: #{tpu_custom_call.1} parent=1 // loop_pre_header
      _
    $region3: #{tpu_custom_call.1} parent=1 // loop_header
      %s15 = sphi 0, %s19
      %p16 = scmp.ge.s32.totalorder %s15, 4
      %s25 = sphi 0, %s27
      %s28 = sphi 0, %s25
      %s29 = sphi 0, %s28
      %s45 = sphi 0, %s29
      %s49 = sphi 0, %s49
      %s51 = sphi 0, %s49
      %s52 = sphi 0, %s51
      %s66 = sphi 0, %s52
      %s70 = sphi 0, %s70
      %s72 = sphi 0, %s70
      %s73 = sphi 0, %s72
      %s87 = sphi 0, %s73
      %s93 = sphi 0, %s95
      %s96 = sphi 0, %s93
      %s97 = sphi 0, %s96
      %s113 = sphi 0, %s97
    $region4: #{tpu_custom_call.1} parent=1 // loop_header_branch
      %18 = sbr.rel (%p16) target = $region8
    $region5: #{tpu_custom_call.1} parent=1 // loop_body
      %s20 = ssub.s32 %s15, 1
      %s21 = ssub.s32 %s15, 2
      %s22 = sadd.s32 %s15, 1
      %s23 = ssub.s32 %s15, %s22
      %p24 = scmp.eq.s32.totalorder %s23, 0
      %s26 = sadd.s32 %s25, 1
      %s27 = scalar_select %p24, %s25, %s26
      %p30 = pneg %p24
      %p31 = scmp.eq.s32.totalorder %s15, 1
      %p32 = por %p30, %p31
      %p33 = scmp.ne.s32.totalorder %s25, %s28
      %p34 = scmp.eq.s32.totalorder %s15, 0
      %p35 = por %p33, %p34
      %p36 = scmp.ne.s32.totalorder %s25, %s28
      %p37 = scmp.eq.s32.totalorder %s20, 1
      %p38 = por %p36, %p37
      %p39 = scmp.ne.s32.totalorder %s28, %s29
      %p40 = scmp.eq.s32.totalorder %s20, 0
      %p41 = por %p39, %p40
      %p42 = scmp.ne.s32.totalorder %s28, %s29
      %p43 = scmp.eq.s32.totalorder %s21, 1
      %p44 = por %p42, %p43
      %p46 = scmp.ne.s32.totalorder %s29, %s45
      %p47 = scmp.eq.s32.totalorder %s21, 0
      %p48 = por %p46, %p47
      %s50 = sadd.s32 %s49, 1
      %p53 = scmp.eq.s32.totalorder %s15, 1
      %p54 = scmp.ne.s32.totalorder %s49, %s51
      %p55 = scmp.eq.s32.totalorder %s15, 0
      %p56 = por %p54, %p55
      %p57 = scmp.ne.s32.totalorder %s49, %s51
      %p58 = scmp.eq.s32.totalorder %s20, 1
      %p59 = por %p57, %p58
      %p60 = scmp.ne.s32.totalorder %s51, %s52
      %p61 = scmp.eq.s32.totalorder %s20, 0
      %p62 = por %p60, %p61
      %p63 = scmp.ne.s32.totalorder %s51, %s52
      %p64 = scmp.eq.s32.totalorder %s21, 1
      %p65 = por %p63, %p64
      %p67 = scmp.ne.s32.totalorder %s52, %s66
      %p68 = scmp.eq.s32.totalorder %s21, 0
      %p69 = por %p67, %p68
      %s71 = sadd.s32 %s70, 1
      %p74 = scmp.eq.s32.totalorder %s15, 1
      %p75 = scmp.ne.s32.totalorder %s70, %s72
      %p76 = scmp.eq.s32.totalorder %s15, 0
      %p77 = por %p75, %p76
      %p78 = scmp.ne.s32.totalorder %s70, %s72
      %p79 = scmp.eq.s32.totalorder %s20, 1
      %p80 = por %p78, %p79
      %p81 = scmp.ne.s32.totalorder %s72, %s73
      %p82 = scmp.eq.s32.totalorder %s20, 0
      %p83 = por %p81, %p82
      %p84 = scmp.ne.s32.totalorder %s72, %s73
      %p85 = scmp.eq.s32.totalorder %s21, 1
      %p86 = por %p84, %p85
      %p88 = scmp.ne.s32.totalorder %s73, %s87
      %p89 = scmp.eq.s32.totalorder %s21, 0
      %p90 = por %p88, %p89
      %s91 = ssub.s32 %s15, %s22
      %p92 = scmp.eq.s32.totalorder %s91, 0
      %s94 = sadd.s32 %s93, 1
      %s95 = scalar_select %p92, %s93, %s94
      %p98 = pneg %p92
      %p99 = scmp.eq.s32.totalorder %s15, 1
      %p100 = por %p98, %p99
      %p101 = scmp.ne.s32.totalorder %s93, %s96
      %p102 = scmp.eq.s32.totalorder %s15, 0
      %p103 = por %p101, %p102
      %p104 = scmp.ne.s32.totalorder %s93, %s96
      %p105 = scmp.eq.s32.totalorder %s20, 1
      %p106 = por %p104, %p105
      %p107 = scmp.ne.s32.totalorder %s96, %s97
      %p108 = scmp.eq.s32.totalorder %s20, 0
      %p109 = por %p107, %p108
      %p110 = scmp.ne.s32.totalorder %s96, %s97
      %p111 = scmp.eq.s32.totalorder %s21, 1
      %p112 = por %p110, %p111
      %p114 = scmp.ne.s32.totalorder %s97, %s113
      %p115 = scmp.eq.s32.totalorder %s21, 0
      %p116 = por %p114, %p115
      %p117 = scmp.le.s32.totalorder 1, %s15
      %p118 = scmp.lt.s32.totalorder %s15, 3
      %p119 = pnand %p117, %p118
      %p120 = pneg %p119
      // Predicated region
      $region9: #{tpu_custom_call.1} parent=5 // pred_check
        _
      $region10: #{tpu_custom_call.1} parent=5 // pred_check_branch
        %122 = sbr.rel (%p119) target = $region12
      $region11: #{tpu_custom_call.1} parent=5 // pred_region
        %s123 = ssub.s32 %s15, 1
        // Predicated region
        $region13: #{tpu_custom_call.1} parent=11 // pred_check
          %p124 = pneg %p62
        $region14: #{tpu_custom_call.1} parent=11 // pred_check_branch
          %126 = sbr.rel (%p124) target = $region16
        $region15: #{tpu_custom_call.1} parent=11 // pred_region
          _
        $region16: #{tpu_custom_call.1} parent=11 // pred_fallthru
          _
        // Predicated region
        $region17: #{tpu_custom_call.1} parent=11 // pred_check
          %p127 = pneg %p83
        $region18: #{tpu_custom_call.1} parent=11 // pred_check_branch
          %129 = sbr.rel (%p127) target = $region20
        $region19: #{tpu_custom_call.1} parent=11 // pred_region
          _
        $region20: #{tpu_custom_call.1} parent=11 // pred_fallthru
          _
      $region12: #{tpu_custom_call.1} parent=5 // pred_fallthru
        _
      %p130 = scmp.lt.s32.totalorder %s15, 2
      // Predicated region
      $region21: #{tpu_custom_call.1} parent=5 // pred_check
        %p131 = pneg %p130
      $region22: #{tpu_custom_call.1} parent=5 // pred_check_branch
        %133 = sbr.rel (%p131) target = $region24
      $region23: #{tpu_custom_call.1} parent=5 // pred_region
        // Predicated region
        $region25: #{tpu_custom_call.1} parent=23 // pred_check
          %p134 = pneg %p35
        $region26: #{tpu_custom_call.1} parent=23 // pred_check_branch
          %136 = sbr.rel (%p134) target = $region28
        $region27: #{tpu_custom_call.1} parent=23 // pred_region
          %s137 = sand.u32 %s25, 1
          %s138 = scalar_lea.sflag [#allocation3], %s137
          %s139 = sand.u32 %s25, 1
          %s140 = smul.addr %s139, 128
          %s141 = scalar_lea.vmem [#allocation2], %s140
          %143 = vsyncadd %s138, 0
          %s144 = smul.addr %s15, 16
          %s145 = smul.addr %s144, 8
          %s146 = scalar_lea.hbm %s0, %s145
          %s147 = sshll.u32 %s146, 4
          %s148 = int_to_ptr.hbm [resolvable:$true] %s147
          %s149 = sshll.u32 %s141, 4
          %s150 = int_to_ptr.vmem [resolvable:$true] %s149
          %155 = dma.hbm_to_vmem [thread:$0]  %s148, 2048, %s150, %s138, 256, 256, 16
        $region28: #{tpu_custom_call.1} parent=23 // pred_fallthru
          _
      $region24: #{tpu_custom_call.1} parent=5 // pred_fallthru
        _
      %p156 = scmp.le.s32.totalorder 1, %s15
      %p157 = scmp.lt.s32.totalorder %s15, 3
      %p158 = pnand %p156, %p157
      %p159 = pneg %p158
      // Predicated region
      $region29: #{tpu_custom_call.1} parent=5 // pred_check
        _
      $region30: #{tpu_custom_call.1} parent=5 // pred_check_branch
        %161 = sbr.rel (%p158) target = $region32
      $region31: #{tpu_custom_call.1} parent=5 // pred_region
        %s162 = ssub.s32 %s15, 1
        %s163 = sand.u32 %s28, 1
        %s164 = scalar_lea.sflag [#allocation3], %s163
        %s165 = sand.u32 %s28, 1
        %s166 = smul.addr %s165, 128
        %s167 = scalar_lea.vmem [#allocation2], %s166
        // Predicated region
        $region33: #{tpu_custom_call.1} parent=31 // pred_check
          %p168 = pneg %p41
        $region34: #{tpu_custom_call.1} parent=31 // pred_check_branch
          %170 = sbr.rel (%p168) target = $region36
        $region35: #{tpu_custom_call.1} parent=31 // pred_region
          %172 = dma.done %s164, 2048
        $region36: #{tpu_custom_call.1} parent=31 // pred_fallthru
          _
        %s173 = sand.u32 %s28, 1
        %s174 = scalar_lea.sflag [#allocation3], %s173
        %s175 = sand.u32 %s28, 1
        %s176 = smul.addr %s175, 128
        %s177 = scalar_lea.vmem [#allocation2], %s176
        %p178 = pneg %p41
        %p179 = pneg %p38
        %p180 = pneg %p62
        %p181 = pneg %p59
        %p182 = pneg %p83
        %p183 = pneg %p80
        %p184 = pneg %p109
        %p185 = pneg %p106
        %s186 = sand.u32 %s96, 1
        %s187 = scalar_lea.sflag [#allocation4], %s186
        %s188 = sand.u32 %s96, 1
        %s189 = smul.addr %s188, 128
        %s190 = scalar_lea.vmem [#allocation5], %s189
        %v191 = vld [vmem:[%s167] sm:$0xff]
        %v192 = vld [vmem:[%s167 + $0x8] sm:$0xff]
        %v193 = vld [vmem:[%s167 + $0x10] sm:$0xff]
        %v194 = vld [vmem:[%s167 + $0x18] sm:$0xff]
        %v195 = vld [vmem:[%s167 + $0x20] sm:$0xff]
        %v196 = vld [vmem:[%s167 + $0x28] sm:$0xff]
        %v197 = vld [vmem:[%s167 + $0x30] sm:$0xff]
        %v198 = vld [vmem:[%s167 + $0x38] sm:$0xff]
        %v199 = vld [vmem:[%s167 + $0x40] sm:$0xff]
        %v200 = vld [vmem:[%s167 + $0x48] sm:$0xff]
        %v201 = vld [vmem:[%s167 + $0x50] sm:$0xff]
        %v202 = vld [vmem:[%s167 + $0x58] sm:$0xff]
        %v203 = vld [vmem:[%s167 + $0x60] sm:$0xff]
        %v204 = vld [vmem:[%s167 + $0x68] sm:$0xff]
        %v205 = vld [vmem:[%s167 + $0x70] sm:$0xff]
        %v206 = vld [vmem:[%s167 + $0x78] sm:$0xff]
        %v207 = vmax.f32 %v191, %v192
        %208 = vmax.xlane.f32.xlu0 %v207
        %v209 = vpop.xlane.xlu0 %208
        %v210 = vmax.f32 %v193, %v194
        %211 = vmax.xlane.f32.xlu0 %v210
        %v212 = vpop.xlane.xlu0 %211
        %v213 = vmax.f32 %v195, %v196
        %214 = vmax.xlane.f32.xlu0 %v213
        %v215 = vpop.xlane.xlu0 %214
        %v216 = vmax.f32 %v197, %v198
        %217 = vmax.xlane.f32.xlu0 %v216
        %v218 = vpop.xlane.xlu0 %217
        %v219 = vmax.f32 %v199, %v200
        %220 = vmax.xlane.f32.xlu0 %v219
        %v221 = vpop.xlane.xlu0 %220
        %v222 = vmax.f32 %v201, %v202
        %223 = vmax.xlane.f32.xlu0 %v222
        %v224 = vpop.xlane.xlu0 %223
        %v225 = vmax.f32 %v203, %v204
        %226 = vmax.xlane.f32.xlu0 %v225
        %v227 = vpop.xlane.xlu0 %226
        %v228 = vmax.f32 %v205, %v206
        %229 = vmax.xlane.f32.xlu0 %v228
        %v230 = vpop.xlane.xlu0 %229
        %v231 = vadd.f32 %v191, %v192
        %232 = vadd.xlane.f32.xlu0 %v231
        %v233 = vpop.xlane.xlu0 %232
        %v234 = vadd.f32 %v193, %v194
        %235 = vadd.xlane.f32.xlu0 %v234
        %v236 = vpop.xlane.xlu0 %235
        %v237 = vadd.f32 %v195, %v196
        %238 = vadd.xlane.f32.xlu0 %v237
        %v239 = vpop.xlane.xlu0 %238
        %v240 = vadd.f32 %v197, %v198
        %241 = vadd.xlane.f32.xlu0 %v240
        %v242 = vpop.xlane.xlu0 %241
        %v243 = vadd.f32 %v199, %v200
        %244 = vadd.xlane.f32.xlu0 %v243
        %v245 = vpop.xlane.xlu0 %244
        %v246 = vadd.f32 %v201, %v202
        %247 = vadd.xlane.f32.xlu0 %v246
        %v248 = vpop.xlane.xlu0 %247
        %v249 = vadd.f32 %v203, %v204
        %250 = vadd.xlane.f32.xlu0 %v249
        %v251 = vpop.xlane.xlu0 %250
        %v252 = vadd.f32 %v205, %v206
        %253 = vadd.xlane.f32.xlu0 %v252
        %v254 = vpop.xlane.xlu0 %253
        %v255 = vmul.f32 %v233, 0.00390625
        %v256 = vmul.f32 %v236, 0.00390625
        %v257 = vmul.f32 %v239, 0.00390625
        %v258 = vmul.f32 %v242, 0.00390625
        %v259 = vmul.f32 %v245, 0.00390625
        %v260 = vmul.f32 %v248, 0.00390625
        %v261 = vmul.f32 %v251, 0.00390625
        %v262 = vmul.f32 %v254, 0.00390625
        %v263 = vld [vmem:[%s1] sm:$0xff]
        %v264 = vld [vmem:[%s1 + $0x8] sm:$0xff]
        %v265 = vld [vmem:[%s1 + $0x10] sm:$0xff]
        %v266 = vld [vmem:[%s1 + $0x18] sm:$0xff]
        %v267 = vld [vmem:[%s1 + $0x20] sm:$0xff]
        %v268 = vld [vmem:[%s1 + $0x28] sm:$0xff]
        %v269 = vld [vmem:[%s1 + $0x30] sm:$0xff]
        %v270 = vld [vmem:[%s1 + $0x38] sm:$0xff]
        %v279 = vlaneseq
        %v280 = vand.u32 %v279, 127
        %v281 = vperm.slane %v255, %v280
        %v282 = vadd.s32 %v280, 4294967288
        %v283 = vperm.slane %v256, %v282
        %vm284 = vcmask 130112
        %v285 = vsel %vm284, %v283, %v281
        %v286 = vadd.s32 %v280, 4294967280
        %v287 = vperm.slane %v257, %v286
        %vm288 = vcmask 195712
        %v289 = vsel %vm288, %v287, %v285
        %v290 = vadd.s32 %v280, 4294967272
        %v291 = vperm.slane %v258, %v290
        %vm292 = vcmask 261312
        %v293 = vsel %vm292, %v291, %v289
        %v294 = vadd.s32 %v280, 4294967264
        %v295 = vperm.slane %v259, %v294
        %vm296 = vcmask 326912
        %v297 = vsel %vm296, %v295, %v293
        %v298 = vadd.s32 %v280, 4294967256
        %v299 = vperm.slane %v260, %v298
        %vm300 = vcmask 392512
        %v301 = vsel %vm300, %v299, %v297
        %v302 = vadd.s32 %v280, 4294967248
        %v303 = vperm.slane %v261, %v302
        %vm304 = vcmask 458112
        %v305 = vsel %vm304, %v303, %v301
        %v306 = vadd.s32 %v280, 4294967240
        %v307 = vperm.slane %v262, %v306
        %vm308 = vcmask 523712
        %v309 = vsel %vm308, %v307, %v305
        %vm310 = vcmask 523264
        %v311 = vsel %vm310, %v309, 0
        %313 = vmatpush.msra.mxu0 0.0
        %314 = vmatpush.msra.mxu0 0.0
        %315 = vmatpush.msra.mxu0 0.0
        %316 = vmatpush.msra.mxu0 0.0
        %317 = vmatpush.msra.mxu0 0.0
        %318 = vmatpush.msra.mxu0 0.0
        %319 = vmatpush.msra.mxu0 0.0
        %320 = vmatpush.msra.mxu0 0.0
        %321 = vmatpush.msra.mxu0 %v270
        %322 = vmatpush.msra.mxu0 %v269
        %323 = vmatpush.msra.mxu0 %v268
        %324 = vmatpush.msra.mxu0 %v267
        %325 = vmatpush.msra.mxu0 %v266
        %326 = vmatpush.msra.mxu0 %v265
        %327 = vmatpush.msra.mxu0 %v264
        %328 = vmatpush.msra.mxu0 %v263
        %329 = vmatmul.f32.gmra.mxu0 %v311
        %v330 = vpop.f32.mrf.mxu0
        %v331 = vadd.f32 0.0, %v330
        %332 = vdwg.mxu0
        %v333 = vmax.f32 %v331, 0.0
        %v334 = vld [vmem:[%s2] sm:$0xf]
        %v343 = vperm.slane %v209, %v280
        %v344 = vperm.slane %v212, %v282
        %v345 = vsel %vm284, %v344, %v343
        %v346 = vperm.slane %v215, %v286
        %v347 = vsel %vm288, %v346, %v345
        %v348 = vperm.slane %v218, %v290
        %v349 = vsel %vm292, %v348, %v347
        %v350 = vperm.slane %v221, %v294
        %v351 = vsel %vm296, %v350, %v349
        %v352 = vperm.slane %v224, %v298
        %v353 = vsel %vm300, %v352, %v351
        %v354 = vperm.slane %v227, %v302
        %v355 = vsel %vm304, %v354, %v353
        %v356 = vperm.slane %v230, %v306
        %v357 = vsel %vm308, %v356, %v355
        %v358 = vsel %vm310, %v357, 0
        %360 = vmatpush.msra.mxu0 0.0
        %361 = vmatpush.msra.mxu0 0.0
        %362 = vmatpush.msra.mxu0 0.0
        %363 = vmatpush.msra.mxu0 0.0
        %364 = vmatpush.msra.mxu0 0.0
        %365 = vmatpush.msra.mxu0 0.0
        %366 = vmatpush.msra.mxu0 0.0
        %367 = vmatpush.msra.mxu0 0.0
        %368 = vmatpush.msra.mxu0 %v270
        %369 = vmatpush.msra.mxu0 %v269
        %370 = vmatpush.msra.mxu0 %v268
        %371 = vmatpush.msra.mxu0 %v267
        %372 = vmatpush.msra.mxu0 %v266
        %373 = vmatpush.msra.mxu0 %v265
        %374 = vmatpush.msra.mxu0 %v264
        %375 = vmatpush.msra.mxu0 %v263
        %376 = vmatmul.f32.gmra.mxu0 %v358
        %v377 = vpop.f32.mrf.mxu0
        %v378 = vadd.f32 0.0, %v377
        %379 = vdwg.mxu0
        %v380 = vmax.f32 %v378, 0.0
        %vm381 = vcmask 31744
        %v383 = vsel %vm381, %v380, 0
        %vm385 = vcmask 1043456
        %v387 = vsel %vm385, %v334, 0
        %389 = vmatpush.msra.mxu0 0.0
        %390 = vmatpush.msra.mxu0 0.0
        %391 = vmatpush.msra.mxu0 0.0
        %392 = vmatpush.msra.mxu0 0.0
        %393 = vmatpush.msra.mxu0 0.0
        %394 = vmatpush.msra.mxu0 0.0
        %395 = vmatpush.msra.mxu0 0.0
        %396 = vmatpush.msra.mxu0 0.0
        %397 = vmatpush.msra.mxu0 0.0
        %398 = vmatpush.msra.mxu0 0.0
        %399 = vmatpush.msra.mxu0 0.0
        %400 = vmatpush.msra.mxu0 0.0
        %401 = vmatpush.msra.mxu0 0.0
        %402 = vmatpush.msra.mxu0 0.0
        %403 = vmatpush.msra.mxu0 0.0
        %404 = vmatpush.msra.mxu0 %v387
        %405 = vmatmul.f32.gmra.mxu0 %v383
        %v406 = vpop.f32.mrf.mxu0
        %v407 = vadd.f32 0.0, %v406
        %408 = vdwg.mxu0
        %v410 = vsel %vm381, %v333, 0
        %412 = vmatpush.msra.mxu0 0.0
        %413 = vmatpush.msra.mxu0 0.0
        %414 = vmatpush.msra.mxu0 0.0
        %415 = vmatpush.msra.mxu0 0.0
        %416 = vmatpush.msra.mxu0 0.0
        %417 = vmatpush.msra.mxu0 0.0
        %418 = vmatpush.msra.mxu0 0.0
        %419 = vmatpush.msra.mxu0 0.0
        %420 = vmatpush.msra.mxu0 0.0
        %421 = vmatpush.msra.mxu0 0.0
        %422 = vmatpush.msra.mxu0 0.0
        %423 = vmatpush.msra.mxu0 0.0
        %424 = vmatpush.msra.mxu0 0.0
        %425 = vmatpush.msra.mxu0 0.0
        %426 = vmatpush.msra.mxu0 0.0
        %427 = vmatpush.msra.mxu0 %v387
        %428 = vmatmul.f32.gmra.mxu0 %v410
        %v429 = vpop.f32.mrf.mxu0
        %v430 = vadd.f32 %v407, %v429
        %431 = vdwg.mxu0
        %v432 = vxor.u32 %v430, 2147483648
        %v433 = vmul.f32 %v432, 1.442695
        %v434 = vpow.pop %v433
        %v435 = vadd.f32 %v434, 1.0
        %v436 = vrcp.pop %v435
        %v437 = vmul.f32 %v435, %v436
        %v438 = vsub.f32 1.0, %v437
        %v439 = vmul.f32 %v436, %v438
        %v440 = vadd.f32 %v436, %v439
        %vm441 = vweird.f32 %v435
        %vm442 = vweird.f32 %v436
        %vm443 = vmor %vm441, %vm442
        %v444 = vsel %vm443, %v436, %v440
        %v445 = vand.u32 2147483647, %v435
        %vm446 = vcmp.eq.f32.partialorder %v445, 8.507059e+37
        %v447 = vand.u32 %v435, 2147483648
        %v448 = vor.u32 1.1754944e-38, %v447
        %v449 = vsel %vm446, %v448, %v444
        %v450 = vmul.f32 1.0, %v449
        %v451 = vperm.slane %v450, 0
        %v452 = vlaneseq
        %v453 = vshrl.u32 %v452, 7
        %455 = vset.pattern.permute.xlu0 %v453
        %456 = vperm.xlu0 %455, %v451
        %v457 = vpop.permute.xlu0 %456
        %v458 = vlaneseq
        %v459 = vshrl.u32 %v458, 7
        %v460 = vadd.s32 %v459, 8
        %461 = vset.pattern.permute.xlu0 %v460
        %462 = vperm.xlu0 %461, %v451
        %v463 = vpop.permute.xlu0 %462
        %v464 = vlaneseq
        %v465 = vshrl.u32 %v464, 7
        %v466 = vadd.s32 %v465, 16
        %467 = vset.pattern.permute.xlu0 %v466
        %468 = vperm.xlu0 %467, %v451
        %v469 = vpop.permute.xlu0 %468
        %v470 = vlaneseq
        %v471 = vshrl.u32 %v470, 7
        %v472 = vadd.s32 %v471, 24
        %473 = vset.pattern.permute.xlu0 %v472
        %474 = vperm.xlu0 %473, %v451
        %v475 = vpop.permute.xlu0 %474
        %v476 = vlaneseq
        %v477 = vshrl.u32 %v476, 7
        %v478 = vadd.s32 %v477, 32
        %479 = vset.pattern.permute.xlu0 %v478
        %480 = vperm.xlu0 %479, %v451
        %v481 = vpop.permute.xlu0 %480
        %v482 = vlaneseq
        %v483 = vshrl.u32 %v482, 7
        %v484 = vadd.s32 %v483, 40
        %485 = vset.pattern.permute.xlu0 %v484
        %486 = vperm.xlu0 %485, %v451
        %v487 = vpop.permute.xlu0 %486
        %v488 = vlaneseq
        %v489 = vshrl.u32 %v488, 7
        %v490 = vadd.s32 %v489, 48
        %491 = vset.pattern.permute.xlu0 %v490
        %492 = vperm.xlu0 %491, %v451
        %v493 = vpop.permute.xlu0 %492
        %v494 = vlaneseq
        %v495 = vshrl.u32 %v494, 7
        %v496 = vadd.s32 %v495, 56
        %497 = vset.pattern.permute.xlu0 %v496
        %498 = vperm.xlu0 %497, %v451
        %v499 = vpop.permute.xlu0 %498
        %v500 = vmul.f32 %v191, %v457
        %v501 = vmul.f32 %v192, %v457
        %v502 = vmul.f32 %v193, %v463
        %v503 = vmul.f32 %v194, %v463
        %v504 = vmul.f32 %v195, %v469
        %v505 = vmul.f32 %v196, %v469
        %v506 = vmul.f32 %v197, %v475
        %v507 = vmul.f32 %v198, %v475
        %v508 = vmul.f32 %v199, %v481
        %v509 = vmul.f32 %v200, %v481
        %v510 = vmul.f32 %v201, %v487
        %v511 = vmul.f32 %v202, %v487
        %v512 = vmul.f32 %v203, %v493
        %v513 = vmul.f32 %v204, %v493
        %v514 = vmul.f32 %v205, %v499
        %v515 = vmul.f32 %v206, %v499
        %516 = vst [vmem:[%s190] sm:$0xff] %v500
        %517 = vst [vmem:[%s190 + $0x8] sm:$0xff] %v501
        %518 = vst [vmem:[%s190 + $0x10] sm:$0xff] %v502
        %519 = vst [vmem:[%s190 + $0x18] sm:$0xff] %v503
        %520 = vst [vmem:[%s190 + $0x20] sm:$0xff] %v504
        %521 = vst [vmem:[%s190 + $0x28] sm:$0xff] %v505
        %522 = vst [vmem:[%s190 + $0x30] sm:$0xff] %v506
        %523 = vst [vmem:[%s190 + $0x38] sm:$0xff] %v507
        %524 = vst [vmem:[%s190 + $0x40] sm:$0xff] %v508
        %525 = vst [vmem:[%s190 + $0x48] sm:$0xff] %v509
        %526 = vst [vmem:[%s190 + $0x50] sm:$0xff] %v510
        %527 = vst [vmem:[%s190 + $0x58] sm:$0xff] %v511
        %528 = vst [vmem:[%s190 + $0x60] sm:$0xff] %v512
        %529 = vst [vmem:[%s190 + $0x68] sm:$0xff] %v513
        %530 = vst [vmem:[%s190 + $0x70] sm:$0xff] %v514
        %531 = vst [vmem:[%s190 + $0x78] sm:$0xff] %v515
        %s532 = sand.u32 %s96, 1
        %s533 = scalar_lea.sflag [#allocation4], %s532
        %s534 = sand.u32 %s96, 1
        %s535 = smul.addr %s534, 128
        %s536 = scalar_lea.vmem [#allocation5], %s535
        // Predicated region
        $region37: #{tpu_custom_call.1} parent=31 // pred_check
          %p537 = pneg %p106
        $region38: #{tpu_custom_call.1} parent=31 // pred_check_branch
          %539 = sbr.rel (%p537) target = $region40
        $region39: #{tpu_custom_call.1} parent=31 // pred_region
          %541 = vsyncadd %s533, 0
          %s542 = smul.addr %s20, 16
          %s543 = smul.addr %s542, 8
          %s544 = scalar_lea.hbm %s3, %s543
          %s545 = sshll.u32 %s536, 4
          %s546 = int_to_ptr.vmem [resolvable:$true] %s545
          %s547 = sshll.u32 %s544, 4
          %s548 = int_to_ptr.hbm [resolvable:$true] %s547
          %553 = dma.vmem_to_hbm [thread:$0]  %s546, 2048, %s548, %s533, 256, 256, 16
        $region40: #{tpu_custom_call.1} parent=31 // pred_fallthru
          _
      $region32: #{tpu_custom_call.1} parent=5 // pred_fallthru
        _
      %p554 = scmp.le.s32.totalorder 2, %s15
      // Predicated region
      $region41: #{tpu_custom_call.1} parent=5 // pred_check
        %p555 = pneg %p554
      $region42: #{tpu_custom_call.1} parent=5 // pred_check_branch
        %557 = sbr.rel (%p555) target = $region44
      $region43: #{tpu_custom_call.1} parent=5 // pred_region
        %s558 = ssub.s32 %s15, 2
        // Predicated region
        $region45: #{tpu_custom_call.1} parent=43 // pred_check
          %p559 = pneg %p112
        $region46: #{tpu_custom_call.1} parent=43 // pred_check_branch
          %561 = sbr.rel (%p559) target = $region48
        $region47: #{tpu_custom_call.1} parent=43 // pred_region
          %s562 = sand.u32 %s97, 1
          %s563 = scalar_lea.sflag [#allocation4], %s562
          %s564 = sand.u32 %s97, 1
          %s565 = smul.addr %s564, 128
          %s566 = scalar_lea.vmem [#allocation5], %s565
          %568 = dma.done %s563, 2048
        $region48: #{tpu_custom_call.1} parent=43 // pred_fallthru
          _
      $region44: #{tpu_custom_call.1} parent=5 // pred_fallthru
        _
    $region6: #{tpu_custom_call.1} parent=1 // loop_footer
      %s19 = sadd.s32 1, %s15
    $region7: #{tpu_custom_call.1} parent=1 // loop_footer_branch
      %14 = sbr.rel target = $region3
    $region8: #{tpu_custom_call.1} parent=1 // loop_exit
      _
    %569 = vsyncpa [#allocation3], 1
    %s570 = scalar_lea.sflag [#allocation3], 1
    %571 = vsyncpa %s570, 1
    %572 = vsyncpa [#allocation4], 1
    %s573 = scalar_lea.sflag [#allocation4], 1
    %574 = vsyncpa %s573, 1

</llo_original>
